<compile_context>
chip_gen: v7x
topology: tpu7x:2x2x1
jax: 0.10.0
libtpu: 0.0.40
codegen_flags: <defaults>
</compile_context>

<pallas_src>
import functools

import jax
import jax.numpy as jnp
import numpy as np
from jax.experimental import pallas as pl
from jax.experimental.pallas import tpu as pltpu

LANE = 128
NEG = -1e30


def _round_up(n, m):
    return ((n + m - 1) // m) * m


def _pick_tile(n, pref):
    """Largest multiple of 128 dividing n and <= pref; else the full dim."""
    if n % LANE != 0:
        return n
    t = min(max(LANE, (pref // LANE) * LANE), n)
    while n % t:
        t -= LANE
    return t


def _device_kind():
    try:
        return jax.devices()[0].device_kind.lower()
    except Exception:  # pragma: no cover
        return ""


def _compiler_params(dims):
    kind = _device_kind()
    # Default scoped VMEM limit is only 16/32 MiB; raise it (cap lower on v7x).
    limit = (56 if "v7" in kind else 100) * (2 ** 20)
    return pltpu.CompilerParams(dimension_semantics=dims, vmem_limit_bytes=limit)


def _softmax_dtype():
    # bf16 N^2 softmax path on v6e/v7x; f32 on v5-class chips (no bf16 VPU/EUP).
    return jnp.float32 if "v5" in _device_kind() else jnp.bfloat16


# ----------------------------------------------------------------------------
# Shared in-kernel helpers
# ----------------------------------------------------------------------------
def _project_next(h_b, w_ext_ref, wa_srcT_ref, heads, fop):
    """h_b (tile, f_in_pad) bf16 -> xh (bf16), a_dst (f32, 8 cols), a_srcT (f32)."""
    res = jnp.dot(h_b, w_ext_ref[...], preferred_element_type=jnp.float32)
    xh = res[:, :heads * fop].astype(jnp.bfloat16)          # 128-aligned slice
    a_dst = res[:, heads * fop:heads * fop + 8]              # folded a_dst columns
    a_srcT = jax.lax.dot_general(                            # (8, tile), lane-dense
        wa_srcT_ref[...], h_b, (((1,), (1,)), ((), ())),
        preferred_element_type=jnp.float32)
    return xh, a_dst, a_srcT


def _attn_step(adst_ref, asrcT_ref, xh_ref, adj_ref, m_sc, l_sc, acc_sc,
               heads, fop, sdtype):
    """One online-softmax update over the current (dst_tile, src_tile)."""
    adj_t = adj_ref[...]                                     # int8, stays int8
    neg = jnp.asarray(NEG, sdtype)
    slope = jnp.asarray(0.2, sdtype)
    zero = jnp.asarray(0.0, sdtype)
    for h in range(heads):   # heads is small & static; TODO(synk): fori_loop if heads > 2
        a_d = adst_ref[:, h:h + 1].astype(sdtype)            # (td, 1)
        a_s = asrcT_ref[h:h + 1, :].astype(sdtype)           # (1, ts)
        s = a_d + a_s                                        # (td, ts) in sdtype
        s = jnp.maximum(s, zero) + slope * jnp.minimum(s, zero)   # LeakyReLU(0.2)
        s = jnp.where(adj_t > 0, s, neg)                     # mask straight off int8
        m_tile = jnp.max(s, axis=-1, keepdims=True).astype(jnp.float32)
        m_new = jnp.maximum(m_sc[h], m_tile)                 # f32 running max
        corr = jnp.exp(m_sc[h] - m_new)                      # f32 (td, 1)
        p = jnp.exp(s - m_new.astype(sdtype))                # sdtype (td, ts)
        l_sc[h] = corr * l_sc[h] + jnp.sum(p.astype(jnp.float32), axis=-1,
                                           keepdims=True)    # f32 row sum
        acc_sc[h] = corr * acc_sc[h] + jnp.dot(
            p.astype(jnp.bfloat16), xh_ref[:, h * fop:(h + 1) * fop],
            preferred_element_type=jnp.float32)
        m_sc[h] = m_new


def _attn_combine(l_sc, acc_sc, heads):
    # Deferred normalisation; 1/heads already folded into the W blocks.
    out = acc_sc[0] * pl.reciprocal(l_sc[0], approx=True)
    for h in range(1, heads):
        out = out + acc_sc[h] * pl.reciprocal(l_sc[h], approx=True)
    return out


# ----------------------------------------------------------------------------
# Kernels
# ----------------------------------------------------------------------------
def prep_kernel(x_ref, wft_ref, bft_ref, w1_ref, wa1_ref,
                xh_ref, adst_ref, asrcT_ref, *, heads, fop):
    # feature_transform + ReLU, then layer-1 projection / folded attention scores.
    h0 = jnp.dot(x_ref[...], wft_ref[...], preferred_element_type=jnp.float32)
    h0 = jnp.maximum(h0 + bft_ref[...], 0.0).astype(jnp.bfloat16)
    xh, a_dst, a_srcT = _project_next(h0, w1_ref, wa1_ref, heads, fop)
    xh_ref[...] = xh
    adst_ref[...] = a_dst
    asrcT_ref[...] = a_srcT


def attn_mid_kernel(adst_ref, asrcT_ref, xh_ref, adj_ref, b_ref, wn_ref, wan_ref,
                    xh2_ref, adst2_ref, asrcT2_ref,
                    m_sc, l_sc, acc_sc, *, heads, fop, fop_next, sdtype):
    j = pl.program_id(1)

    @pl.when(j == 0)
    def _():
        m_sc[...] = jnp.full_like(m_sc, NEG)
        l_sc[...] = jnp.zeros_like(l_sc)
        acc_sc[...] = jnp.zeros_like(acc_sc)

    _attn_step(adst_ref, asrcT_ref, xh_ref, adj_ref, m_sc, l_sc, acc_sc,
               heads, fop, sdtype)

    @pl.when(j == pl.num_programs(1) - 1)
    def _():
        out = _attn_combine(l_sc, acc_sc, heads)
        h1 = jnp.maximum(out + b_ref[...], 0.0).astype(jnp.bfloat16)   # ReLU(conv1)
        xh2, a_dst2, a_srcT2 = _project_next(h1, wn_ref, wan_ref, heads, fop_next)
        xh2_ref[...] = xh2
        adst2_ref[...] = a_dst2
        asrcT2_ref[...] = a_srcT2


def attn_out_kernel(adst_ref, asrcT_ref, xh_ref, adj_ref, b_ref, o_ref,
                    m_sc, l_sc, acc_sc, *, heads, fop, sdtype):
    j = pl.program_id(1)

    @pl.when(j == 0)
    def _():
        m_sc[...] = jnp.full_like(m_sc, NEG)
        l_sc[...] = jnp.zeros_like(l_sc)
        acc_sc[...] = jnp.zeros_like(acc_sc)

    _attn_step(adst_ref, asrcT_ref, xh_ref, adj_ref, m_sc, l_sc, acc_sc,
               heads, fop, sdtype)

    @pl.when(j == pl.num_programs(1) - 1)
    def _():
        out = _attn_combine(l_sc, acc_sc, heads)
        o_ref[...] = (out + b_ref[...]).astype(o_ref.dtype)  # conv2: no ReLU, bf16 store


# ----------------------------------------------------------------------------
# Wrapper-side parameter preparation
# ----------------------------------------------------------------------------
def _fold_gat_layer(w, att_src, att_dst, bias, f_in, f_in_pad, f_out, heads):
    f_out_p = _round_up(f_out, LANE)
    w_ext = jnp.zeros((f_in_pad, heads * f_out_p + LANE), jnp.float32)
    wa_srcT = jnp.zeros((8, f_in_pad), jnp.float32)
    for h in range(heads):
        wh = w[:, h * f_out:(h + 1) * f_out]                         # (f_in, f_out)
        # per-head block pre-scaled by 1/heads (concat=False mean); attention
        # columns use the UNscaled W so the logits are unchanged.
        w_ext = w_ext.at[:f_in, h * f_out_p:h * f_out_p + f_out].set(wh / heads)
        w_ext = w_ext.at[:f_in, heads * f_out_p + h].set(wh @ att_dst[h])
        wa_srcT = wa_srcT.at[h, :f_in].set(wh @ att_src[h])
    b_pad = jnp.zeros((1, f_out_p), jnp.float32).at[:, :f_out].set(bias)
    return w_ext.astype(jnp.bfloat16), wa_srcT.astype(jnp.bfloat16), b_pad, f_out_p


def prepare_params(params, in_dim, hidden_dim, out_dim, heads):
    assert heads <= 8
    in_pad = _round_up(in_dim, LANE)
    hid_pad = _round_up(hidden_dim, LANE)
    wft = (jnp.zeros((in_pad, hid_pad), jnp.float32)
           .at[:in_dim, :hidden_dim].set(params["w_ft"]).astype(jnp.bfloat16))
    bft = jnp.zeros((1, hid_pad), jnp.float32).at[:, :hidden_dim].set(params["b_ft"])
    w1_ext, wa1_srcT, b1, fop1 = _fold_gat_layer(
        params["w1"], params["as1"], params["ad1"], params["b1"],
        hidden_dim, hid_pad, hidden_dim, heads)
    w2_ext, wa2_srcT, b2, fop2 = _fold_gat_layer(
        params["w2"], params["as2"], params["ad2"], params["b2"],
        hidden_dim, hid_pad, out_dim, heads)
    return dict(wft=wft, bft=bft, w1_ext=w1_ext, wa1_srcT=wa1_srcT, b1=b1,
                w2_ext=w2_ext, wa2_srcT=wa2_srcT, b2=b2,
                heads=heads, in_dim=in_dim, in_pad=in_pad, hid_pad=hid_pad,
                f_out_pad1=fop1, f_out_pad2=fop2, out_dim=out_dim)


# ----------------------------------------------------------------------------
# Forward: prep -> GAT1 (+ layer-2 projection) -> GAT2
# ----------------------------------------------------------------------------
def gnn_edge_predictor_forward(x, adj_i8, pp):
    n = x.shape[0]
    n_pad = _round_up(n, 8)
    heads = pp["heads"]
    in_pad, hid_pad = pp["in_pad"], pp["hid_pad"]
    fop1, fop2 = pp["f_out_pad1"], pp["f_out_pad2"]
    sdtype = _softmax_dtype()

    tile_dst = _pick_tile(n_pad, 256)
    tile_src = _pick_tile(n_pad, 512)
    n_dst, n_src = n_pad // tile_dst, n_pad // tile_src

    x_pad = (jnp.zeros((n_pad, in_pad), jnp.float32)
             .at[:n, :pp["in_dim"]].set(x).astype(jnp.bfloat16))
    adj_pad = jnp.zeros((n_pad, n_pad), jnp.int8).at[:n, :n].set(adj_i8)

    # ---- Stage 0: feature_transform + layer-1 projection -------------------
    xh1, a1_dst, a1_srcT = pl.pallas_call(
        functools.partial(prep_kernel, heads=heads, fop=fop1),
        grid=(n_dst,),
        in_specs=[
            pl.BlockSpec((tile_dst, in_pad), lambda i: (i, 0)),
            pl.BlockSpec((in_pad, hid_pad), lambda i: (0, 0)),
            pl.BlockSpec((1, hid_pad), lambda i: (0, 0)),
            pl.BlockSpec((hid_pad, heads * fop1 + LANE), lambda i: (0, 0)),
            pl.BlockSpec((8, hid_pad), lambda i: (0, 0)),
        ],
        out_specs=(
            pl.BlockSpec((tile_dst, heads * fop1), lambda i: (i, 0)),
            pl.BlockSpec((tile_dst, 8), lambda i: (i, 0)),
            pl.BlockSpec((8, tile_dst), lambda i: (0, i)),
        ),
        out_shape=(
            jax.ShapeDtypeStruct((n_pad, heads * fop1), jnp.bfloat16),
            jax.ShapeDtypeStruct((n_pad, 8), jnp.float32),
            jax.ShapeDtypeStruct((8, n_pad), jnp.float32),
        ),
        compiler_params=_compiler_params(("parallel",)),
        cost_estimate=pl.CostEstimate(
            flops=2 * n_pad * in_pad * hid_pad
                  + 2 * n_pad * hid_pad * (heads * fop1 + LANE),
            transcendentals=0,
            bytes_accessed=n_pad * in_pad * 2 + n_pad * heads * fop1 * 2
                           + n_pad * 64),
    )(x_pad, pp["wft"], pp["bft"], pp["w1_ext"], pp["wa1_srcT"])

    # ---- Stage 1: GAT layer 1 (online softmax) + fused layer-2 projection --
    xh2, a2_dst, a2_srcT = pl.pallas_call(
        functools.partial(attn_mid_kernel, heads=heads, fop=fop1,
                          fop_next=fop2, sdtype=sdtype),
        grid=(n_dst, n_src),
        in_specs=[
            pl.BlockSpec((tile_dst, 8), lambda i, j: (i, 0)),             # a1_dst
            pl.BlockSpec((8, tile_src), lambda i, j: (0, j)),             # a1_srcT
            pl.BlockSpec((tile_src, heads * fop1), lambda i, j: (j, 0)),  # xh1
            pl.BlockSpec((tile_dst, tile_src), lambda i, j: (i, j)),      # adj int8
            pl.BlockSpec((1, fop1), lambda i, j: (0, 0)),                 # b1
            pl.BlockSpec((hid_pad, heads * fop2 + LANE), lambda i, j: (0, 0)),
            pl.BlockSpec((8, hid_pad), lambda i, j: (0, 0)),
        ],
        out_specs=(
            pl.BlockSpec((tile_dst, heads * fop2), lambda i, j: (i, 0)),
            pl.BlockSpec((tile_dst, 8), lambda i, j: (i, 0)),
            pl.BlockSpec((8, tile_dst), lambda i, j: (0, i)),
        ),
        out_shape=(
            jax.ShapeDtypeStruct((n_pad, heads * fop2), jnp.bfloat16),
            jax.ShapeDtypeStruct((n_pad, 8), jnp.float32),
            jax.ShapeDtypeStruct((8, n_pad), jnp.float32),
        ),
        scratch_shapes=[
            pltpu.VMEM((heads, tile_dst, 1), jnp.float32),      # running max
            pltpu.VMEM((heads, tile_dst, 1), jnp.float32),      # running sum
            pltpu.VMEM((heads, tile_dst, fop1), jnp.float32),   # P@V accumulator
        ],
        compiler_params=_compiler_params(("parallel", "arbitrary")),
        cost_estimate=pl.CostEstimate(
            flops=2 * heads * n_pad * n_pad * fop1
                  + 2 * n_pad * hid_pad * (heads * fop2 + LANE),
            transcendentals=heads * n_pad * n_pad,
            bytes_accessed=n_pad * n_pad + n_dst * n_pad * heads * fop1 * 2
                           + n_pad * (heads * fop2 * 2 + 64)),
    )(a1_dst, a1_srcT, xh1, adj_pad, pp["b1"], pp["w2_ext"], pp["wa2_srcT"])

    # ---- Stage 2: GAT layer 2 (online softmax, no ReLU) ---------------------
    out_pad = pl.pallas_call(
        functools.partial(attn_out_kernel, heads=heads, fop=fop2, sdtype=sdtype),
        grid=(n_dst, n_src),
        in_specs=[
            pl.BlockSpec((tile_dst, 8), lambda i, j: (i, 0)),             # a2_dst
            pl.BlockSpec((8, tile_src), lambda i, j: (0, j)),             # a2_srcT
            pl.BlockSpec((tile_src, heads * fop2), lambda i, j: (j, 0)),  # xh2
            pl.BlockSpec((tile_dst, tile_src), lambda i, j: (i, j)),      # adj int8
            pl.BlockSpec((1, fop2), lambda i, j: (0, 0)),                 # b2
        ],
        out_specs=pl.BlockSpec((tile_dst, fop2), lambda i, j: (i, 0)),
        out_shape=jax.ShapeDtypeStruct((n_pad, fop2), jnp.bfloat16),
        scratch_shapes=[
            pltpu.VMEM((heads, tile_dst, 1), jnp.float32),
            pltpu.VMEM((heads, tile_dst, 1), jnp.float32),
            pltpu.VMEM((heads, tile_dst, fop2), jnp.float32),
        ],
        compiler_params=_compiler_params(("parallel", "arbitrary")),
        cost_estimate=pl.CostEstimate(
            flops=2 * heads * n_pad * n_pad * fop2,
            transcendentals=heads * n_pad * n_pad,
            bytes_accessed=n_pad * n_pad + n_dst * n_pad * heads * fop2 * 2
                           + n_pad * fop2 * 2),
    )(a2_dst, a2_srcT, xh2, adj_pad, pp["b2"])

    return out_pad.astype(jnp.float32)[:n, :pp["out_dim"]]


# ----------------------------------------------------------------------------
# Pure-JAX f32 reference (original, unpadded math) for correctness checking.
# ----------------------------------------------------------------------------
def _ref_gat(x, w, asrc, adst, bias, adj, heads, f_out, apply_relu):
    acc = jnp.zeros((x.shape[0], f_out), jnp.float32)
    for h in range(heads):
        xh = x @ w[:, h * f_out:(h + 1) * f_out]
        a_s = xh @ asrc[h]
        a_d = xh @ adst[h]
        logits = a_d[:, None] + a_s[None, :]
        logits = jnp.where(logits > 0, logits, 0.2 * logits)
        logits = jnp.where(adj > 0, logits, -1e30)
        alpha = jax.nn.softmax(logits, axis=-1)
        acc = acc + alpha @ xh
    out = acc / heads + bias
    return jnp.maximum(out, 0.0) if apply_relu else out


def _ref_forward(x, adj, p, heads):
    h = jnp.maximum(x @ p["w_ft"] + p["b_ft"], 0.0)
    h = _ref_gat(h, p["w1"], p["as1"], p["ad1"], p["b1"], adj, heads,
                 p["b1"].shape[-1], True)
    return _ref_gat(h, p["w2"], p["as2"], p["ad2"], p["b2"], adj, heads,
                    p["b2"].shape[-1], False)


if __name__ == "__main__":
    in_dim, hidden_dim, out_dim, heads = 16, 32, 8, 2
    n_nodes = 16

    key = jax.random.PRNGKey(0)
    ks = jax.random.split(key, 12)

    def rnd(k, shape, scale=0.1):
        return (scale * jax.random.normal(k, shape)).astype(jnp.float32)

    params = {
        # feature_transform: nn.Linear(in_dim, hidden_dim)
        "w_ft": rnd(ks[0], (in_dim, hidden_dim)),
        "b_ft": rnd(ks[1], (1, hidden_dim)),
        # conv1: GATConv(hidden, hidden, heads, concat=False)
        "w1": rnd(ks[2], (hidden_dim, heads * hidden_dim)),
        "as1": rnd(ks[3], (heads, hidden_dim)),
        "ad1": rnd(ks[4], (heads, hidden_dim)),
        "b1": rnd(ks[5], (1, hidden_dim)),
        # conv2: GATConv(hidden, out_dim, heads, concat=False)
        "w2": rnd(ks[6], (hidden_dim, heads * out_dim)),
        "as2": rnd(ks[7], (heads, out_dim)),
        "ad2": rnd(ks[8], (heads, out_dim)),
        "b2": rnd(ks[9], (1, out_dim)),
    }

    # Node features
    x = rnd(ks[10], (n_nodes, in_dim), scale=1.0)

    # edge_index: bidirectional ring graph (2, 2*N), PyG convention
    src = jnp.concatenate([jnp.arange(n_nodes), (jnp.arange(n_nodes) + 1) % n_nodes])
    dst = jnp.concatenate([(jnp.arange(n_nodes) + 1) % n_nodes, jnp.arange(n_nodes)])
    edge_index = jnp.stack([src, dst]).astype(jnp.int32)

    # Dense adjacency mask adj[dst, src] = 1, plus self loops (GATConv default).
    adj_f32 = jnp.zeros((n_nodes, n_nodes), jnp.float32)
    adj_f32 = adj_f32.at[edge_index[1], edge_index[0]].set(1.0)
    adj_f32 = adj_f32.at[jnp.arange(n_nodes), jnp.arange(n_nodes)].set(1.0)
    adj_i8 = adj_f32.astype(jnp.int8)          # kernels consume the int8 mask

    pp = prepare_params(params, in_dim, hidden_dim, out_dim, heads)
    out = gnn_edge_predictor_forward(x, adj_i8, pp)
    out = jax.block_until_ready(out)

    ref = jax.block_until_ready(_ref_forward(x, adj_f32, params, heads))
    # bf16 matmul operands / bf16 softmax path / approx reciprocal vs. f32 ref.
    np.testing.assert_allclose(np.asarray(out), np.asarray(ref),
                               rtol=2.5e-2, atol=2.5e-2)

    print("KERNEL_OK")
</pallas_src>

<mosaic_0001>
module attributes {stable_mosaic.version = 11 : i64} {
  func.func @prep_kernel(%arg0: i32, %arg1: memref<16x128xbf16, #tpu.memory_space<vmem>>, %arg2: memref<128x128xbf16, #tpu.memory_space<vmem>>, %arg3: memref<1x128xf32, #tpu.memory_space<vmem>>, %arg4: memref<128x384xbf16, #tpu.memory_space<vmem>>, %arg5: memref<8x128xbf16, #tpu.memory_space<vmem>>, %arg6: memref<16x256xbf16, #tpu.memory_space<vmem>>, %arg7: memref<16x8xf32, #tpu.memory_space<vmem>>, %arg8: memref<8x16xf32, #tpu.memory_space<vmem>>) attributes {dimension_semantics = [#tpu.dimension_semantics<parallel>], iteration_bounds = array<i64: 1>, scalar_prefetch = 0 : i64, scratch_operands = 0 : i64, tpu.core_type = #tpu.core_type<tc>, window_params = [{transform_indices = @transform_0, window_bounds = array<i64: 16, 128>}, {pipeline_mode = #tpu.pipeline_mode<synchronous>, transform_indices = @transform_1, window_bounds = array<i64: 128, 128>}, {pipeline_mode = #tpu.pipeline_mode<synchronous>, transform_indices = @transform_2, window_bounds = array<i64: 1, 128>}, {pipeline_mode = #tpu.pipeline_mode<synchronous>, transform_indices = @transform_3, window_bounds = array<i64: 128, 384>}, {pipeline_mode = #tpu.pipeline_mode<synchronous>, transform_indices = @transform_4, window_bounds = array<i64: 8, 128>}, {transform_indices = @transform_5, window_bounds = array<i64: 16, 256>}, {transform_indices = @transform_6, window_bounds = array<i64: 16, 8>}, {transform_indices = @transform_7, window_bounds = array<i64: 8, 16>}]} {
    %c0 = arith.constant 0 : index
    %c0_0 = arith.constant 0 : index
    %0 = vector.load %arg1[%c0, %c0_0] : memref<16x128xbf16, #tpu.memory_space<vmem>>, vector<16x128xbf16>
    %c0_1 = arith.constant 0 : index
    %c0_2 = arith.constant 0 : index
    %1 = vector.load %arg2[%c0_1, %c0_2] : memref<128x128xbf16, #tpu.memory_space<vmem>>, vector<128x128xbf16>
    %cst = arith.constant dense<0.000000e+00> : vector<16x128xf32>
    %2 = tpu.matmul %0, %1, %cst {dimension_numbers = #tpu.dot_dimension_numbers<[1], [0], [0], [1], [0, 0, 1, 1], [], []>} : vector<16x128xbf16>, vector<128x128xbf16>, vector<16x128xf32> -> vector<16x128xf32>
    %c0_3 = arith.constant 0 : index
    %c0_4 = arith.constant 0 : index
    %3 = vector.load %arg3[%c0_3, %c0_4] : memref<1x128xf32, #tpu.memory_space<vmem>>, vector<1x128xf32>
    %4 = vector.broadcast %3 : vector<1x128xf32> to vector<16x128xf32>
    %5 = arith.addf %2, %4 : vector<16x128xf32>
    %cst_5 = arith.constant 0.000000e+00 : f32
    %6 = vector.broadcast %cst_5 : f32 to vector<16x128xf32>
    %7 = arith.maximumf %5, %6 : vector<16x128xf32>
    %8 = arith.truncf %7 : vector<16x128xf32> to vector<16x128xbf16>
    %c0_6 = arith.constant 0 : index
    %c0_7 = arith.constant 0 : index
    %9 = vector.load %arg4[%c0_6, %c0_7] : memref<128x384xbf16, #tpu.memory_space<vmem>>, vector<128x384xbf16>
    %cst_8 = arith.constant dense<0.000000e+00> : vector<16x384xf32>
    %10 = tpu.matmul %8, %9, %cst_8 {dimension_numbers = #tpu.dot_dimension_numbers<[1], [0], [0], [1], [0, 0, 1, 1], [], []>} : vector<16x128xbf16>, vector<128x384xbf16>, vector<16x384xf32> -> vector<16x384xf32>
    %11 = vector.extract_strided_slice %10 {offsets = [0, 0], sizes = [16, 256], strides = [1, 1]} : vector<16x384xf32> to vector<16x256xf32>
    %12 = arith.truncf %11 : vector<16x256xf32> to vector<16x256xbf16>
    %13 = vector.extract_strided_slice %10 {offsets = [0, 256], sizes = [16, 8], strides = [1, 1]} : vector<16x384xf32> to vector<16x8xf32>
    %c0_9 = arith.constant 0 : index
    %c0_10 = arith.constant 0 : index
    %14 = vector.load %arg5[%c0_9, %c0_10] : memref<8x128xbf16, #tpu.memory_space<vmem>>, vector<8x128xbf16>
    %cst_11 = arith.constant dense<0.000000e+00> : vector<8x16xf32>
    %15 = tpu.matmul %14, %8, %cst_11 {dimension_numbers = #tpu.dot_dimension_numbers<[1], [1], [0], [0], [0, 0, 1, 0], [], []>} : vector<8x128xbf16>, vector<16x128xbf16>, vector<8x16xf32> -> vector<8x16xf32>
    %c0_12 = arith.constant 0 : index
    %c0_13 = arith.constant 0 : index
    %16 = vector.load %arg6[%c0_12, %c0_13] : memref<16x256xbf16, #tpu.memory_space<vmem>>, vector<16x256xbf16>
    tpu.vector_store %arg6[%c0_12, %c0_13], %12 {strides = array<i32>} : memref<16x256xbf16, #tpu.memory_space<vmem>>, vector<16x256xbf16>,
    %c0_14 = arith.constant 0 : index
    %c0_15 = arith.constant 0 : index
    %17 = vector.load %arg7[%c0_14, %c0_15] : memref<16x8xf32, #tpu.memory_space<vmem>>, vector<16x8xf32>
    tpu.vector_store %arg7[%c0_14, %c0_15], %13 {strides = array<i32>} : memref<16x8xf32, #tpu.memory_space<vmem>>, vector<16x8xf32>,
    %c0_16 = arith.constant 0 : index
    %c0_17 = arith.constant 0 : index
    %18 = vector.load %arg8[%c0_16, %c0_17] : memref<8x16xf32, #tpu.memory_space<vmem>>, vector<8x16xf32>
    tpu.vector_store %arg8[%c0_16, %c0_17], %15 {strides = array<i32>} : memref<8x16xf32, #tpu.memory_space<vmem>>, vector<8x16xf32>,
    return
  }
  func.func @transform_0(%arg0: i32) -> (i32, i32) {
    %c0_i32 = arith.constant 0 : i32
    %c0_i32_0 = arith.constant 0 : i32
    return %arg0, %c0_i32 : i32, i32
  }
  func.func @transform_1(%arg0: i32) -> (i32, i32) {
    %c0_i32 = arith.constant 0 : i32
    %c0_i32_0 = arith.constant 0 : i32
    %c0_i32_1 = arith.constant 0 : i32
    return %c0_i32, %c0_i32_0 : i32, i32
  }
  func.func @transform_2(%arg0: i32) -> (i32, i32) {
    %c0_i32 = arith.constant 0 : i32
    %c0_i32_0 = arith.constant 0 : i32
    %c0_i32_1 = arith.constant 0 : i32
    return %c0_i32, %c0_i32_0 : i32, i32
  }
  func.func @transform_3(%arg0: i32) -> (i32, i32) {
    %c0_i32 = arith.constant 0 : i32
    %c0_i32_0 = arith.constant 0 : i32
    %c0_i32_1 = arith.constant 0 : i32
    return %c0_i32, %c0_i32_0 : i32, i32
  }
  func.func @transform_4(%arg0: i32) -> (i32, i32) {
    %c0_i32 = arith.constant 0 : i32
    %c0_i32_0 = arith.constant 0 : i32
    %c0_i32_1 = arith.constant 0 : i32
    return %c0_i32, %c0_i32_0 : i32, i32
  }
  func.func @transform_5(%arg0: i32) -> (i32, i32) {
    %c0_i32 = arith.constant 0 : i32
    %c0_i32_0 = arith.constant 0 : i32
    return %arg0, %c0_i32 : i32, i32
  }
  func.func @transform_6(%arg0: i32) -> (i32, i32) {
    %c0_i32 = arith.constant 0 : i32
    %c0_i32_0 = arith.constant 0 : i32
    return %arg0, %c0_i32 : i32, i32
  }
  func.func @transform_7(%arg0: i32) -> (i32, i32) {
    %c0_i32 = arith.constant 0 : i32
    %c0_i32_0 = arith.constant 0 : i32
    return %c0_i32, %arg0 : i32, i32
  }
}

</mosaic_0001>

<llo_original>
// kernel: tpu_custom_call.1
$region0: #{tpu_custom_call.1}
  #allocation0 [shape = 'u32[]', space=smem, size = 0x4, offset = 0x4, fixed_abs, tag = 'smem constant byte address 0x4 - core index']
  #allocation1 [shape = 'u32[144,128]{1,0:T(1,128)}', space=vmem, size = 0x12000, scoped, tag = 'internal scratch']
  %s0 = inlined_call_operand.hbm [shape: bf16[16,128], index: 0, kind: input, shape index: {}]
  %s1 = inlined_call_operand.hbm [shape: bf16[128,128], index: 1, kind: input, shape index: {}]
  %s2 = inlined_call_operand.hbm [shape: f32[1,128], index: 2, kind: input, shape index: {}]
  %s3 = inlined_call_operand.hbm [shape: bf16[128,384], index: 3, kind: input, shape index: {}]
  %s4 = inlined_call_operand.hbm [shape: bf16[8,128], index: 4, kind: input, shape index: {}]
  %s5 = inlined_call_operand.hbm [shape: bf16[16,256], index: 5, kind: output, shape index: {0}]
  %s6 = inlined_call_operand.hbm [shape: f32[16,8], index: 6, kind: output, shape index: {1}]
  %s7 = inlined_call_operand.hbm [shape: f32[8,16], index: 7, kind: output, shape index: {2}]
  %8 = xla_tuple %s5, %s6, %s7
  %s9 = sld [smem:[#allocation0]]
  $region66: #{tpu_custom_call.1} parent=0
    _
  %s11 = ssub.s32 1, %s9
  %s12 = scalar_select 0, %s11, %s9
  $region1: #{tpu_custom_call.1} parent=0
    #allocation2 [shape = 'u8[4096]{0}', space=vmem, size = 0x1000, scoped, tag = 'input window, operand 0, single buffered']
    #allocation3 [shape = 's32[1]{0}', space=sflag, size = 0x4, scoped, tag = 'scoped memory for tpu_custom_call.1']
    #allocation4 [shape = 's32[1]{0}', space=sflag, size = 0x4, scoped, tag = 'scoped memory for tpu_custom_call.1']
    #allocation5 [shape = 'u8[32768]{0}', space=vmem, size = 0x8000, scoped, tag = 'input window, operand 1, single buffered']
    #allocation6 [shape = 's32[1]{0}', space=sflag, size = 0x4, scoped, tag = 'scoped memory for tpu_custom_call.1']
    #allocation7 [shape = 'u8[512]{0}', space=vmem, size = 0x400, scoped, tag = 'input window, operand 2, single buffered']
    #allocation8 [shape = 'u8[98304]{0}', space=vmem, size = 0x18000, scoped, tag = 'input window, operand 3, single buffered']
    #allocation9 [shape = 's32[1]{0}', space=sflag, size = 0x4, scoped, tag = 'scoped memory for tpu_custom_call.1']
    #allocation10 [shape = 'u8[2048]{0}', space=vmem, size = 0x800, scoped, tag = 'input window, operand 4, single buffered']
    #allocation11 [shape = 'u8[8192]{0}', space=vmem, size = 0x2000, scoped, tag = 'output window, operand 0, single buffered']
    #allocation12 [shape = 'u8[8192]{0}', space=vmem, size = 0x2000, scoped, tag = 'output window, operand 1, single buffered']
    #allocation13 [shape = 's32[1]{0}', space=sflag, size = 0x4, scoped, tag = 'scoped memory for tpu_custom_call.1']
    #allocation14 [shape = 'u8[4096]{0}', space=vmem, size = 0x1000, scoped, tag = 'output window, operand 2, single buffered']
    %13 = vsyncpa [#allocation3], 0
    %14 = vsyncpa [#allocation6], 0
    %15 = vsyncpa [#allocation9], 0
    %16 = vsyncpa [#allocation4], 0
    %17 = vsyncpa [#allocation13], 0
    // Predicated region
    $region2: #{tpu_custom_call.1} parent=1 // pred_check
      _
    $region3: #{tpu_custom_call.1} parent=1 // pred_check_branch
      %19 = sbr.rel (0) target = $region5
    $region4: #{tpu_custom_call.1} parent=1 // pred_region
      %s21 = ssub.s32 128, 128
      %22 = vsyncadd [#allocation3], %s21
      %s23 = sshll.u32 [#allocation2], 4
      %s24 = int_to_ptr.vmem [resolvable:$true] %s23
      %29 = dma.hbm_to_vmem [thread:$0]  %s0, 128, %s24, [#allocation3], 64, 64, 4
    $region5: #{tpu_custom_call.1} parent=1 // pred_fallthru
      _
    // Predicated region
    $region6: #{tpu_custom_call.1} parent=1 // pred_check
      _
    $region7: #{tpu_custom_call.1} parent=1 // pred_check_branch
      %31 = sbr.rel (0) target = $region9
    $region8: #{tpu_custom_call.1} parent=1 // pred_region
      %s33 = ssub.s32 1024, 1024
      %34 = vsyncadd [#allocation6], %s33
      %s35 = sshll.u32 [#allocation5], 4
      %s36 = int_to_ptr.vmem [resolvable:$true] %s35
      %41 = dma.hbm_to_vmem [thread:$0]  %s1, 1024, %s36, [#allocation6], 64, 64, 4
    $region9: #{tpu_custom_call.1} parent=1 // pred_fallthru
      _
    // Predicated region
    $region10: #{tpu_custom_call.1} parent=1 // pred_check
      _
    $region11: #{tpu_custom_call.1} parent=1 // pred_check_branch
      %43 = sbr.rel (0) target = $region13
    $region12: #{tpu_custom_call.1} parent=1 // pred_region
      %s45 = ssub.s32 16, 16
      %46 = vsyncadd [#allocation6], %s45
      %s48 = sshll.u32 [#allocation7], 4
      %s49 = int_to_ptr.vmem [resolvable:$true] %s48
      %51 = dma.hbm_to_vmem [thread:$0]  %s2, 16, %s49, [#allocation6]
    $region13: #{tpu_custom_call.1} parent=1 // pred_fallthru
      _
    // Predicated region
    $region14: #{tpu_custom_call.1} parent=1 // pred_check
      _
    $region15: #{tpu_custom_call.1} parent=1 // pred_check_branch
      %53 = sbr.rel (0) target = $region17
    $region16: #{tpu_custom_call.1} parent=1 // pred_region
      %s55 = ssub.s32 3072, 3072
      %56 = vsyncadd [#allocation9], %s55
      %s57 = sshll.u32 [#allocation8], 4
      %s58 = int_to_ptr.vmem [resolvable:$true] %s57
      %63 = dma.hbm_to_vmem [thread:$0]  %s3, 3072, %s58, [#allocation9], 192, 192, 12
    $region17: #{tpu_custom_call.1} parent=1 // pred_fallthru
      _
    // Predicated region
    $region18: #{tpu_custom_call.1} parent=1 // pred_check
      _
    $region19: #{tpu_custom_call.1} parent=1 // pred_check_branch
      %65 = sbr.rel (0) target = $region21
    $region20: #{tpu_custom_call.1} parent=1 // pred_region
      %s67 = ssub.s32 64, 64
      %68 = vsyncadd [#allocation9], %s67
      %s70 = sshll.u32 [#allocation10], 4
      %s71 = int_to_ptr.vmem [resolvable:$true] %s70
      %73 = dma.hbm_to_vmem [thread:$0]  %s4, 64, %s71, [#allocation9]
    $region21: #{tpu_custom_call.1} parent=1 // pred_fallthru
      _
    // Predicated region
    $region22: #{tpu_custom_call.1} parent=1 // pred_check
      _
    $region23: #{tpu_custom_call.1} parent=1 // pred_check_branch
      %75 = sbr.rel (0) target = $region25
    $region24: #{tpu_custom_call.1} parent=1 // pred_region
      %76 = dma.done [#allocation3], 128
    $region25: #{tpu_custom_call.1} parent=1 // pred_fallthru
      _
    // Predicated region
    $region26: #{tpu_custom_call.1} parent=1 // pred_check
      _
    $region27: #{tpu_custom_call.1} parent=1 // pred_check_branch
      %78 = sbr.rel (0) target = $region29
    $region28: #{tpu_custom_call.1} parent=1 // pred_region
      %79 = dma.done [#allocation6], 1024
    $region29: #{tpu_custom_call.1} parent=1 // pred_fallthru
      _
    // Predicated region
    $region30: #{tpu_custom_call.1} parent=1 // pred_check
      _
    $region31: #{tpu_custom_call.1} parent=1 // pred_check_branch
      %81 = sbr.rel (0) target = $region33
    $region32: #{tpu_custom_call.1} parent=1 // pred_region
      %82 = dma.done [#allocation6], 16
    $region33: #{tpu_custom_call.1} parent=1 // pred_fallthru
      _
    // Predicated region
    $region34: #{tpu_custom_call.1} parent=1 // pred_check
      _
    $region35: #{tpu_custom_call.1} parent=1 // pred_check_branch
      %84 = sbr.rel (0) target = $region37
    $region36: #{tpu_custom_call.1} parent=1 // pred_region
      %85 = dma.done [#allocation9], 3072
    $region37: #{tpu_custom_call.1} parent=1 // pred_fallthru
      _
    // Predicated region
    $region38: #{tpu_custom_call.1} parent=1 // pred_check
      _
    $region39: #{tpu_custom_call.1} parent=1 // pred_check_branch
      %87 = sbr.rel (0) target = $region41
    $region40: #{tpu_custom_call.1} parent=1 // pred_region
      %88 = dma.done [#allocation9], 64
    $region41: #{tpu_custom_call.1} parent=1 // pred_fallthru
      _
    %v90 = vld [vmem:[#allocation2] sm:$0xf]
    %v91 = vld [vmem:[#allocation2 + $0x4] sm:$0xf]
    %v92 = vld [vmem:[#allocation5] sm:$0xf]
    %v93 = vld [vmem:[#allocation5 + $0x4] sm:$0xf]
    %v94 = vld [vmem:[#allocation5 + $0x8] sm:$0xf]
    %v95 = vld [vmem:[#allocation5 + $0xc] sm:$0xf]
    %v96 = vld [vmem:[#allocation5 + $0x10] sm:$0xf]
    %v97 = vld [vmem:[#allocation5 + $0x14] sm:$0xf]
    %v98 = vld [vmem:[#allocation5 + $0x18] sm:$0xf]
    %v99 = vld [vmem:[#allocation5 + $0x1c] sm:$0xf]
    %v100 = vld [vmem:[#allocation5 + $0x20] sm:$0xf]
    %v101 = vld [vmem:[#allocation5 + $0x24] sm:$0xf]
    %v102 = vld [vmem:[#allocation5 + $0x28] sm:$0xf]
    %v103 = vld [vmem:[#allocation5 + $0x2c] sm:$0xf]
    %v104 = vld [vmem:[#allocation5 + $0x30] sm:$0xf]
    %v105 = vld [vmem:[#allocation5 + $0x34] sm:$0xf]
    %v106 = vld [vmem:[#allocation5 + $0x38] sm:$0xf]
    %v107 = vld [vmem:[#allocation5 + $0x3c] sm:$0xf]
    %v108 = vld [vmem:[#allocation7] sm:$0x1]
    %v110 = vlaneseq
    %v111 = vshrl.u32 %v110, 7
    %v112 = vsub.s32 0, %v111
    %v113 = vrot.slane %v108, %v112
    %v117 = vunpack.c.l.b16 %v90
    %v118 = vunpack.c.l.b16 %v91
    %v119 = vpack.c.b16 %v118, %v117
    %v137 = vunpack.c.l.b16 %v92
    %v138 = vunpack.c.l.b16 %v93
    %v139 = vunpack.c.l.b16 %v94
    %v140 = vunpack.c.l.b16 %v95
    %v141 = vunpack.c.l.b16 %v96
    %v142 = vunpack.c.l.b16 %v97
    %v143 = vunpack.c.l.b16 %v98
    %v144 = vunpack.c.l.b16 %v99
    %v145 = vunpack.c.l.b16 %v100
    %v146 = vunpack.c.l.b16 %v101
    %v147 = vunpack.c.l.b16 %v102
    %v148 = vunpack.c.l.b16 %v103
    %v149 = vunpack.c.l.b16 %v104
    %v150 = vunpack.c.l.b16 %v105
    %v151 = vunpack.c.l.b16 %v106
    %v152 = vunpack.c.l.b16 %v107
    %v153 = vpack.c.b16 %v138, %v137
    %v154 = vpack.c.b16 %v140, %v139
    %v155 = vpack.c.b16 %v142, %v141
    %v156 = vpack.c.b16 %v144, %v143
    %v157 = vpack.c.b16 %v146, %v145
    %v158 = vpack.c.b16 %v148, %v147
    %v159 = vpack.c.b16 %v150, %v149
    %v160 = vpack.c.b16 %v152, %v151
    %169 = vmatprep.subr.bf16.mxu0 0
    %170 = vmatpush1.bf16.msra.mxu0 %v153
    %171 = vmatprep.subr.bf16.mxu0 0
    %172 = vmatpush1.bf16.msra.mxu0 %v154
    %173 = vmatprep.subr.bf16.mxu0 0
    %174 = vmatpush1.bf16.msra.mxu0 %v155
    %175 = vmatprep.subr.bf16.mxu0 0
    %176 = vmatpush1.bf16.msra.mxu0 %v156
    %177 = vmatprep.subr.bf16.mxu0 0
    %178 = vmatpush1.bf16.msra.mxu0 %v157
    %179 = vmatprep.subr.bf16.mxu0 0
    %180 = vmatpush1.bf16.msra.mxu0 %v158
    %181 = vmatprep.subr.bf16.mxu0 0
    %182 = vmatpush1.bf16.msra.mxu0 %v159
    %183 = vmatprep.subr.bf16.mxu0 0
    %184 = vmatpush1.bf16.msra.mxu0 %v160
    %185 = vmatprep.subr.bf16.mxu0 0
    %186 = vmatpush1.bf16.msra.mxu0 0
    %187 = vmatprep.subr.bf16.mxu0 0
    %188 = vmatpush1.bf16.msra.mxu0 0
    %189 = vmatprep.subr.bf16.mxu0 0
    %190 = vmatpush1.bf16.msra.mxu0 0
    %191 = vmatprep.subr.bf16.mxu0 0
    %192 = vmatpush1.bf16.msra.mxu0 0
    %193 = vmatprep.subr.bf16.mxu0 0
    %194 = vmatpush1.bf16.msra.mxu0 0
    %195 = vmatprep.subr.bf16.mxu0 0
    %196 = vmatpush1.bf16.msra.mxu0 0
    %197 = vmatprep.subr.bf16.mxu0 0
    %198 = vmatpush1.bf16.msra.mxu0 0
    %199 = vmatprep.subr.bf16.mxu0 0
    %200 = vmatpush1.bf16.msra.mxu0 0
    %201 = vmatprep.mubr.bf16.mxu0 0
    %202 = vmatmul.mubr.bf16.gmra.mrb[0].mxu0 %v119
    %v203 = vpop.f32.mrb[0].mxu0
    %v204 = vadd.f32 %v113, %v203
    %v205 = vpop.f32.mrb[0].mxu0
    %v206 = vpop.f32.mrb[0].mxu0
    %v207 = vadd.f32 %v113, %v206
    %v208 = vpop.f32.mrb[0].mxu0
    %209 = vdwg.mxu0
    %v210 = vmax.f32 %v204, 0.0
    %v211 = vmax.f32 %v207, 0.0
    %v212 = vpack.c.bf16 %v211, %v210
    %v213 = vld [vmem:[#allocation8] sm:$0xff]
    %v214 = vld [vmem:[#allocation8 + $0x8] sm:$0xf]
    %v215 = vld [vmem:[#allocation8 + $0xc] sm:$0xff]
    %v216 = vld [vmem:[#allocation8 + $0x14] sm:$0xf]
    %v217 = vld [vmem:[#allocation8 + $0x18] sm:$0xff]
    %v218 = vld [vmem:[#allocation8 + $0x20] sm:$0xf]
    %v219 = vld [vmem:[#allocation8 + $0x24] sm:$0xff]
    %v220 = vld [vmem:[#allocation8 + $0x2c] sm:$0xf]
    %v221 = vld [vmem:[#allocation8 + $0x30] sm:$0xff]
    %v222 = vld [vmem:[#allocation8 + $0x38] sm:$0xf]
    %v223 = vld [vmem:[#allocation8 + $0x3c] sm:$0xff]
    %v224 = vld [vmem:[#allocation8 + $0x44] sm:$0xf]
    %v225 = vld [vmem:[#allocation8 + $0x48] sm:$0xff]
    %v226 = vld [vmem:[#allocation8 + $0x50] sm:$0xf]
    %v227 = vld [vmem:[#allocation8 + $0x54] sm:$0xff]
    %v228 = vld [vmem:[#allocation8 + $0x5c] sm:$0xf]
    %v229 = vld [vmem:[#allocation8 + $0x60] sm:$0xff]
    %v230 = vld [vmem:[#allocation8 + $0x68] sm:$0xf]
    %v231 = vld [vmem:[#allocation8 + $0x6c] sm:$0xff]
    %v232 = vld [vmem:[#allocation8 + $0x74] sm:$0xf]
    %v233 = vld [vmem:[#allocation8 + $0x78] sm:$0xff]
    %v234 = vld [vmem:[#allocation8 + $0x80] sm:$0xf]
    %v235 = vld [vmem:[#allocation8 + $0x84] sm:$0xff]
    %v236 = vld [vmem:[#allocation8 + $0x8c] sm:$0xf]
    %v237 = vld [vmem:[#allocation8 + $0x90] sm:$0xff]
    %v238 = vld [vmem:[#allocation8 + $0x98] sm:$0xf]
    %v239 = vld [vmem:[#allocation8 + $0x9c] sm:$0xff]
    %v240 = vld [vmem:[#allocation8 + $0xa4] sm:$0xf]
    %v241 = vld [vmem:[#allocation8 + $0xa8] sm:$0xff]
    %v242 = vld [vmem:[#allocation8 + $0xb0] sm:$0xf]
    %v243 = vld [vmem:[#allocation8 + $0xb4] sm:$0xff]
    %v244 = vld [vmem:[#allocation8 + $0xbc] sm:$0xf]
    %v277 = vunpack.c.l.b16 %v213
    %v278 = vunpack.c.h.b16 %v213
    %v279 = vunpack.c.l.b16 %v214
    %v280 = vunpack.c.l.b16 %v215
    %v281 = vunpack.c.h.b16 %v215
    %v282 = vunpack.c.l.b16 %v216
    %v283 = vunpack.c.l.b16 %v217
    %v284 = vunpack.c.h.b16 %v217
    %v285 = vunpack.c.l.b16 %v218
    %v286 = vunpack.c.l.b16 %v219
    %v287 = vunpack.c.h.b16 %v219
    %v288 = vunpack.c.l.b16 %v220
    %v289 = vunpack.c.l.b16 %v221
    %v290 = vunpack.c.h.b16 %v221
    %v291 = vunpack.c.l.b16 %v222
    %v292 = vunpack.c.l.b16 %v223
    %v293 = vunpack.c.h.b16 %v223
    %v294 = vunpack.c.l.b16 %v224
    %v295 = vunpack.c.l.b16 %v225
    %v296 = vunpack.c.h.b16 %v225
    %v297 = vunpack.c.l.b16 %v226
    %v298 = vunpack.c.l.b16 %v227
    %v299 = vunpack.c.h.b16 %v227
    %v300 = vunpack.c.l.b16 %v228
    %v301 = vunpack.c.l.b16 %v229
    %v302 = vunpack.c.h.b16 %v229
    %v303 = vunpack.c.l.b16 %v230
    %v304 = vunpack.c.l.b16 %v231
    %v305 = vunpack.c.h.b16 %v231
    %v306 = vunpack.c.l.b16 %v232
    %v307 = vunpack.c.l.b16 %v233
    %v308 = vunpack.c.h.b16 %v233
    %v309 = vunpack.c.l.b16 %v234
    %v310 = vunpack.c.l.b16 %v235
    %v311 = vunpack.c.h.b16 %v235
    %v312 = vunpack.c.l.b16 %v236
    %v313 = vunpack.c.l.b16 %v237
    %v314 = vunpack.c.h.b16 %v237
    %v315 = vunpack.c.l.b16 %v238
    %v316 = vunpack.c.l.b16 %v239
    %v317 = vunpack.c.h.b16 %v239
    %v318 = vunpack.c.l.b16 %v240
    %v319 = vunpack.c.l.b16 %v241
    %v320 = vunpack.c.h.b16 %v241
    %v321 = vunpack.c.l.b16 %v242
    %v322 = vunpack.c.l.b16 %v243
    %v323 = vunpack.c.h.b16 %v243
    %v324 = vunpack.c.l.b16 %v244
    %v325 = vpack.c.b16 %v280, %v277
    %v326 = vpack.c.b16 %v281, %v278
    %v327 = vpack.c.b16 %v282, %v279
    %v328 = vpack.c.b16 %v286, %v283
    %v329 = vpack.c.b16 %v287, %v284
    %v330 = vpack.c.b16 %v288, %v285
    %v331 = vpack.c.b16 %v292, %v289
    %v332 = vpack.c.b16 %v293, %v290
    %v333 = vpack.c.b16 %v294, %v291
    %v334 = vpack.c.b16 %v298, %v295
    %v335 = vpack.c.b16 %v299, %v296
    %v336 = vpack.c.b16 %v300, %v297
    %v337 = vpack.c.b16 %v304, %v301
    %v338 = vpack.c.b16 %v305, %v302
    %v339 = vpack.c.b16 %v306, %v303
    %v340 = vpack.c.b16 %v310, %v307
    %v341 = vpack.c.b16 %v311, %v308
    %v342 = vpack.c.b16 %v312, %v309
    %v343 = vpack.c.b16 %v316, %v313
    %v344 = vpack.c.b16 %v317, %v314
    %v345 = vpack.c.b16 %v318, %v315
    %v346 = vpack.c.b16 %v322, %v319
    %v347 = vpack.c.b16 %v323, %v320
    %v348 = vpack.c.b16 %v324, %v321
    %373 = vmatprep.subr.bf16.mxu0 %v326
    %374 = vmatpush1.bf16.msra.mxu0 %v325
    %375 = vmatprep.subr.bf16.mxu0 %v329
    %376 = vmatpush1.bf16.msra.mxu0 %v328
    %377 = vmatprep.subr.bf16.mxu0 %v332
    %378 = vmatpush1.bf16.msra.mxu0 %v331
    %379 = vmatprep.subr.bf16.mxu0 %v335
    %380 = vmatpush1.bf16.msra.mxu0 %v334
    %381 = vmatprep.subr.bf16.mxu0 %v338
    %382 = vmatpush1.bf16.msra.mxu0 %v337
    %383 = vmatprep.subr.bf16.mxu0 %v341
    %384 = vmatpush1.bf16.msra.mxu0 %v340
    %385 = vmatprep.subr.bf16.mxu0 %v344
    %386 = vmatpush1.bf16.msra.mxu0 %v343
    %387 = vmatprep.subr.bf16.mxu0 %v347
    %388 = vmatpush1.bf16.msra.mxu0 %v346
    %389 = vmatprep.subr.bf16.mxu0 0
    %390 = vmatpush1.bf16.msra.mxu0 0
    %391 = vmatprep.subr.bf16.mxu0 0
    %392 = vmatpush1.bf16.msra.mxu0 0
    %393 = vmatprep.subr.bf16.mxu0 0
    %394 = vmatpush1.bf16.msra.mxu0 0
    %395 = vmatprep.subr.bf16.mxu0 0
    %396 = vmatpush1.bf16.msra.mxu0 0
    %397 = vmatprep.subr.bf16.mxu0 0
    %398 = vmatpush1.bf16.msra.mxu0 0
    %399 = vmatprep.subr.bf16.mxu0 0
    %400 = vmatpush1.bf16.msra.mxu0 0
    %401 = vmatprep.subr.bf16.mxu0 0
    %402 = vmatpush1.bf16.msra.mxu0 0
    %403 = vmatprep.subr.bf16.mxu0 0
    %404 = vmatpush1.bf16.msra.mxu0 0
    %405 = vmatprep.mubr.bf16.mxu0 0
    %406 = vmatmul.mubr.bf16.gmra.mrb[0].mxu0 %v212
    %v407 = vpop.f32.mrb[0].mxu0
    %v408 = vadd.f32 0.0, %v407
    %v409 = vpop.f32.mrb[0].mxu0
    %v410 = vadd.f32 0.0, %v409
    %v411 = vpop.f32.mrb[0].mxu0
    %v412 = vadd.f32 0.0, %v411
    %v413 = vpop.f32.mrb[0].mxu0
    %v414 = vadd.f32 0.0, %v413
    %415 = vdwg.mxu0
    %416 = vmatprep.subr.bf16.mxu0 0
    %417 = vmatpush1.bf16.msra.mxu0 %v327
    %418 = vmatprep.subr.bf16.mxu0 0
    %419 = vmatpush1.bf16.msra.mxu0 %v330
    %420 = vmatprep.subr.bf16.mxu0 0
    %421 = vmatpush1.bf16.msra.mxu0 %v333
    %422 = vmatprep.subr.bf16.mxu0 0
    %423 = vmatpush1.bf16.msra.mxu0 %v336
    %424 = vmatprep.subr.bf16.mxu0 0
    %425 = vmatpush1.bf16.msra.mxu0 %v339
    %426 = vmatprep.subr.bf16.mxu0 0
    %427 = vmatpush1.bf16.msra.mxu0 %v342
    %428 = vmatprep.subr.bf16.mxu0 0
    %429 = vmatpush1.bf16.msra.mxu0 %v345
    %430 = vmatprep.subr.bf16.mxu0 0
    %431 = vmatpush1.bf16.msra.mxu0 %v348
    %432 = vmatprep.subr.bf16.mxu0 0
    %433 = vmatpush1.bf16.msra.mxu0 0
    %434 = vmatprep.subr.bf16.mxu0 0
    %435 = vmatpush1.bf16.msra.mxu0 0
    %436 = vmatprep.subr.bf16.mxu0 0
    %437 = vmatpush1.bf16.msra.mxu0 0
    %438 = vmatprep.subr.bf16.mxu0 0
    %439 = vmatpush1.bf16.msra.mxu0 0
    %440 = vmatprep.subr.bf16.mxu0 0
    %441 = vmatpush1.bf16.msra.mxu0 0
    %442 = vmatprep.subr.bf16.mxu0 0
    %443 = vmatpush1.bf16.msra.mxu0 0
    %444 = vmatprep.subr.bf16.mxu0 0
    %445 = vmatpush1.bf16.msra.mxu0 0
    %446 = vmatprep.subr.bf16.mxu0 0
    %447 = vmatpush1.bf16.msra.mxu0 0
    %448 = vmatprep.mubr.bf16.mxu0 0
    %449 = vmatmul.mubr.bf16.gmra.mrb[0].mxu0 %v212
    %v450 = vpop.f32.mrb[0].mxu0
    %v451 = vadd.f32 0.0, %v450
    %v452 = vpop.f32.mrb[0].mxu0
    %v453 = vpop.f32.mrb[0].mxu0
    %v454 = vadd.f32 0.0, %v453
    %v455 = vpop.f32.mrb[0].mxu0
    %456 = vdwg.mxu0
    %v457 = vpack.c.bf16 %v412, %v408
    %v458 = vpack.c.bf16 %v414, %v410
    %v459 = vld [vmem:[#allocation10] sm:$0xf]
    %460 = vmatprep.subr.bf16.mxu0 0
    %461 = vmatpush1.bf16.xpose.msra.mxu0 %v212
    %462 = vmatprep.subr.bf16.mxu0 0
    %463 = vmatpush1.bf16.xpose.msra.mxu0 0
    %464 = vmatprep.subr.bf16.mxu0 0
    %465 = vmatpush1.bf16.xpose.msra.mxu0 0
    %466 = vmatprep.subr.bf16.mxu0 0
    %467 = vmatpush1.bf16.xpose.msra.mxu0 0
    %468 = vmatprep.subr.bf16.mxu0 0
    %469 = vmatpush1.bf16.xpose.msra.mxu0 0
    %470 = vmatprep.subr.bf16.mxu0 0
    %471 = vmatpush1.bf16.xpose.msra.mxu0 0
    %472 = vmatprep.subr.bf16.mxu0 0
    %473 = vmatpush1.bf16.xpose.msra.mxu0 0
    %474 = vmatprep.subr.bf16.mxu0 0
    %475 = vmatpush1.bf16.xpose.msra.mxu0 0
    %476 = vmatprep.subr.bf16.mxu0 0
    %477 = vmatpush1.bf16.xpose.msra.mxu0 0
    %478 = vmatprep.subr.bf16.mxu0 0
    %479 = vmatpush1.bf16.xpose.msra.mxu0 0
    %480 = vmatprep.subr.bf16.mxu0 0
    %481 = vmatpush1.bf16.xpose.msra.mxu0 0
    %482 = vmatprep.subr.bf16.mxu0 0
    %483 = vmatpush1.bf16.xpose.msra.mxu0 0
    %484 = vmatprep.subr.bf16.mxu0 0
    %485 = vmatpush1.bf16.xpose.msra.mxu0 0
    %486 = vmatprep.subr.bf16.mxu0 0
    %487 = vmatpush1.bf16.xpose.msra.mxu0 0
    %488 = vmatprep.subr.bf16.mxu0 0
    %489 = vmatpush1.bf16.xpose.msra.mxu0 0
    %490 = vmatprep.subr.bf16.mxu0 0
    %491 = vmatpush1.bf16.xpose.msra.mxu0 0
    %492 = vmatprep.mubr.bf16.mxu0 0
    %493 = vmatmul.mubr.bf16.gmra.mrb[0].mxu0 %v459
    %v494 = vpop.f32.mrb[0].mxu0
    %v495 = vadd.f32 0.0, %v494
    %v496 = vpop.f32.mrb[0].mxu0
    %v497 = vpop.f32.mrb[0].mxu0
    %v498 = vpop.f32.mrb[0].mxu0
    %499 = vdwg.mxu0
    %v502 = vunpack.c.l.b16 %v457
    %v503 = vunpack.c.l.b16 %v458
    %v504 = vunpack.c.h.b16 %v457
    %v505 = vunpack.c.h.b16 %v458
    %v506 = vpack.c.b16 %v503, %v502
    %v507 = vpack.c.b16 %v505, %v504
    %510 = vst [vmem:[#allocation11] sm:$0xff] %v506
    %511 = vst [vmem:[#allocation11 + $0x8] sm:$0xff] %v507
    %vm512 = vcmask 64512
    %513 = vst.msk [vmem:[#allocation12] sm:$0xff] %vm512, %v451
    %514 = vst.msk [vmem:[#allocation12 + $0x8] sm:$0xff] %vm512, %v454
    %vm515 = vcmask 130048
    %516 = vst.msk [vmem:[#allocation14] sm:$0xff] %vm515, %v495
    // Predicated region
    $region42: #{tpu_custom_call.1} parent=1 // pred_check
      _
    $region43: #{tpu_custom_call.1} parent=1 // pred_check_branch
      %518 = sbr.rel (0) target = $region45
    $region44: #{tpu_custom_call.1} parent=1 // pred_region
      %s520 = ssub.s32 256, 256
      %521 = vsyncadd [#allocation4], %s520
      %s522 = sshll.u32 [#allocation11], 4
      %s523 = int_to_ptr.vmem [resolvable:$true] %s522
      %528 = dma.vmem_to_hbm [thread:$0]  %s523, 256, %s5, [#allocation4], 128, 128, 8
    $region45: #{tpu_custom_call.1} parent=1 // pred_fallthru
      _
    // Predicated region
    $region46: #{tpu_custom_call.1} parent=1 // pred_check
      _
    $region47: #{tpu_custom_call.1} parent=1 // pred_check_branch
      %530 = sbr.rel (0) target = $region49
    $region48: #{tpu_custom_call.1} parent=1 // pred_region
      %s532 = ssub.s32 256, 256
      %533 = vsyncadd [#allocation13], %s532
      %s534 = sshll.u32 [#allocation12], 4
      %s535 = int_to_ptr.vmem [resolvable:$true] %s534
      %540 = dma.vmem_to_hbm [thread:$0]  %s535, 256, %s6, [#allocation13], 128, 128, 8
    $region49: #{tpu_custom_call.1} parent=1 // pred_fallthru
      _
    // Predicated region
    $region50: #{tpu_custom_call.1} parent=1 // pred_check
      _
    $region51: #{tpu_custom_call.1} parent=1 // pred_check_branch
      %542 = sbr.rel (0) target = $region53
    $region52: #{tpu_custom_call.1} parent=1 // pred_region
      %s544 = ssub.s32 128, 128
      %545 = vsyncadd [#allocation13], %s544
      %s547 = sshll.u32 [#allocation14], 4
      %s548 = int_to_ptr.vmem [resolvable:$true] %s547
      %550 = dma.vmem_to_hbm [thread:$0]  %s548, 128, %s7, [#allocation13]
    $region53: #{tpu_custom_call.1} parent=1 // pred_fallthru
      _
    // Predicated region
    $region54: #{tpu_custom_call.1} parent=1 // pred_check
      _
    $region55: #{tpu_custom_call.1} parent=1 // pred_check_branch
      %552 = sbr.rel (0) target = $region57
    $region56: #{tpu_custom_call.1} parent=1 // pred_region
      %553 = dma.done [#allocation4], 256
    $region57: #{tpu_custom_call.1} parent=1 // pred_fallthru
      _
    // Predicated region
    $region58: #{tpu_custom_call.1} parent=1 // pred_check
      _
    $region59: #{tpu_custom_call.1} parent=1 // pred_check_branch
      %555 = sbr.rel (0) target = $region61
    $region60: #{tpu_custom_call.1} parent=1 // pred_region
      %556 = dma.done [#allocation13], 256
    $region61: #{tpu_custom_call.1} parent=1 // pred_fallthru
      _
    // Predicated region
    $region62: #{tpu_custom_call.1} parent=1 // pred_check
      _
    $region63: #{tpu_custom_call.1} parent=1 // pred_check_branch
      %558 = sbr.rel (0) target = $region65
    $region64: #{tpu_custom_call.1} parent=1 // pred_region
      %559 = dma.done [#allocation13], 128
    $region65: #{tpu_custom_call.1} parent=1 // pred_fallthru
      _
    %560 = vsyncpa [#allocation3], 1
    %561 = vsyncpa [#allocation6], 1
    %562 = vsyncpa [#allocation9], 1
    %563 = vsyncpa [#allocation4], 1
    %564 = vsyncpa [#allocation13], 1

</llo_original>
